<compile_context>
chip_gen: v5e
topology: v5e:2x2
jax: 0.10.0
libtpu: 0.0.40
codegen_flags: <defaults>
</compile_context>

<pallas_src>
import functools

import jax
import jax.numpy as jnp
from jax import lax
from jax.experimental import pallas as pl
from jax.experimental.pallas import tpu as pltpu


_TILE_BYTES = 2 * 1024 * 1024          # ~2 MiB per-array tile
_DEFAULT_MIN_PALLAS_ELEMENTS = 1 << 17  # below this, let XLA fuse it


def _ipow(x, k: int):
    """x ** k for static int k >= 1 via square-and-multiply (<= 2*log2(k) muls)."""
    acc = None
    base = x
    while k:
        if k & 1:
            acc = base if acc is None else acc * base
        k >>= 1
        if k:
            base = base * base
    return acc


# --------------------------------------------------------------------------
# Kernels
# --------------------------------------------------------------------------

def _fullrow_kernel(*refs, n, h, feats, mode, has_g, compute_dtype):
    """One column block spans all features: static per-chunk slices & powers."""
    if has_g:
        x_ref, g_ref, o_ref = refs
    else:
        (x_ref, o_ref), g_ref = refs, None
    x = x_ref[...].astype(compute_dtype)
    g = g_ref[...].astype(compute_dtype) if has_g else None
    for i in range(n):
        lo = i * h
        hi = (i + 1) * h if i < n - 1 else feats
        xi = x[:, lo:hi]
        if mode == "forward":
            y = _ipow(xi, i + 1)
            if g is not None:
                y = y * g[:, lo:hi]
        else:  # local derivative of x**(i+1): (i+1) * x**i   (times g if fused)
            if i == 0:
                y = g[:, lo:hi] if g is not None else jnp.ones_like(xi)
            else:
                y = _ipow(xi, i) * float(i + 1)
                if g is not None:
                    y = y * g[:, lo:hi]
        o_ref[:, lo:hi] = y.astype(o_ref.dtype)


def _chunk_kernel(*refs, n, blocks_per_chunk, mode, has_g, compute_dtype):
    """Column blocks divide the chunk width: exponent is a per-block scalar."""
    if has_g:
        x_ref, g_ref, o_ref = refs
    else:
        (x_ref, o_ref), g_ref = refs, None
    # Scalar exponent for this chunk-aligned column block (scalar-ALU only).
    k = jnp.minimum(pl.program_id(1) // blocks_per_chunk, n - 1) + 1
    x = x_ref[...].astype(compute_dtype)
    g = g_ref[...].astype(compute_dtype) if has_g else None
    for kk in range(1, n + 1):
        @pl.when(k == kk)
        def _(kk=kk):
            if mode == "forward":
                y = _ipow(x, kk)
                if g is not None:
                    y = y * g
            else:
                if kk == 1:
                    y = g if g is not None else jnp.ones_like(x)
                else:
                    y = _ipow(x, kk - 1) * float(kk)
                    if g is not None:
                        y = y * g
            o_ref[...] = y.astype(o_ref.dtype)


def _masked_kernel(*refs, n, h, block_cols, mode, has_g, compute_dtype):
    """Fallback for chunk boundaries not lane-aligned: per-lane exponent."""
    if has_g:
        x_ref, g_ref, o_ref = refs
    else:
        (x_ref, o_ref), g_ref = refs, None
    x = x_ref[...].astype(compute_dtype)
    # Exponent depends only on the column: derive it once at (1, block_cols)
    # and let the selects broadcast it across sublanes.
    col = pl.program_id(1) * block_cols + lax.broadcasted_iota(
        jnp.int32, (1, block_cols), 1)
    power = jnp.minimum(col // h, n - 1) + 1
    masks = [power == kk for kk in range(2, n + 1)]
    if mode == "forward":
        p = x
        y = x
        for idx, kk in enumerate(range(2, n + 1)):
            p = p * x                       # x ** kk
            y = jnp.where(masks[idx], p, y)
    else:  # local derivative: chunk i -> (i+1) * x**i
        p = x                               # x ** (kk - 1)
        y = jnp.ones_like(x)                # chunk 0: d/dx x == 1
        for idx, kk in enumerate(range(2, n + 1)):
            y = jnp.where(masks[idx], p * float(kk), y)
            if kk < n:
                p = p * x
    if has_g:
        y = y * g_ref[...].astype(compute_dtype)
    o_ref[...] = y.astype(o_ref.dtype)


# --------------------------------------------------------------------------
# Tiling / dispatch
# --------------------------------------------------------------------------

def _pick_strategy(batch: int, feats: int, n: int, dtype):
    h = feats // n
    itemsize = jnp.dtype(dtype).itemsize
    row_align = 8 * max(1, 4 // itemsize)   # 8 (f32), 16 (bf16), 32 (int8)
    lane_aligned = (h % 128 == 0)
    if lane_aligned and feats * itemsize * row_align <= _TILE_BYTES:
        # Full-width contiguous blocks; static lane-aligned per-chunk slices.
        bc, strategy = feats, "fullrow"
    elif lane_aligned:
        # Very wide features: column blocks that divide h -> scalar exponent.
        bc = 128
        for c in range(min(h, 2048), 127, -128):
            if h % c == 0:
                bc = c
                break
        strategy = "chunk"
    else:
        # Unaligned chunk boundaries: per-lane masked path.
        bc = feats if feats * itemsize * row_align <= _TILE_BYTES else 2048
        strategy = "masked"
    rows = max(row_align, _TILE_BYTES // max(1, bc * itemsize))
    rows = (rows // row_align) * row_align
    br = batch if batch <= rows else rows
    return br, bc, strategy


def _polyn_xla(x, n, mode, g=None):
    """Plain-XLA fallback (used for tiny inputs and as the reference)."""
    _, f = x.shape
    h = f // n
    outs = []
    for i in range(n):
        lo, hi = i * h, ((i + 1) * h if i < n - 1 else f)
        xi = x[:, lo:hi]
        outs.append(xi ** (i + 1) if mode == "forward" else (i + 1) * xi ** i)
    y = jnp.concatenate(outs, axis=1).astype(x.dtype)
    if g is not None:
        y = (y * g.astype(y.dtype)).astype(x.dtype)
    return y


def _polyn_pallas(x, n, mode, *, g=None,
                  block_rows=None, block_cols=None,
                  donate_input=False,
                  min_pallas_elements=_DEFAULT_MIN_PALLAS_ELEMENTS):
    assert x.ndim == 2, "layout: [batch, features]"
    assert mode in ("forward", "grad")
    b, f = x.shape
    assert 1 <= n <= f, "features must be >= n"
    if g is not None:
        assert g.shape == x.shape
    if x.size < min_pallas_elements:
        # Launch + pipeline overhead dwarfs a few KiB of elementwise work.
        return _polyn_xla(x, n, mode, g=g)

    h = f // n
    if x.dtype in (jnp.dtype(jnp.float32), jnp.dtype(jnp.bfloat16)):
        compute_dtype = x.dtype          # native bf16 VALU on v6e/v7x
    else:
        compute_dtype = jnp.float32

    br, bc, strategy = _pick_strategy(b, f, n, x.dtype)
    if block_cols is not None:
        bc = block_cols
        if h % 128 == 0 and bc == f:
            strategy = "fullrow"
        elif h % 128 == 0 and bc % 128 == 0 and h % bc == 0:
            strategy = "chunk"
        else:
            strategy = "masked"
    if block_rows is not None:
        br = block_rows

    has_g = g is not None
    if strategy == "fullrow":
        kernel = functools.partial(_fullrow_kernel, n=n, h=h, feats=f,
                                   mode=mode, has_g=has_g,
                                   compute_dtype=compute_dtype)
    elif strategy == "chunk":
        kernel = functools.partial(_chunk_kernel, n=n,
                                   blocks_per_chunk=max(1, h // bc),
                                   mode=mode, has_g=has_g,
                                   compute_dtype=compute_dtype)
    else:
        kernel = functools.partial(_masked_kernel, n=n, h=h, block_cols=bc,
                                   mode=mode, has_g=has_g,
                                   compute_dtype=compute_dtype)

    grid = (pl.cdiv(b, br), pl.cdiv(f, bc))
    spec = pl.BlockSpec((br, bc), lambda i, j: (i, j))
    in_specs = [spec, spec] if has_g else [spec]
    args = (x, g) if has_g else (x,)

    kwargs = {}
    if donate_input:
        kwargs["input_output_aliases"] = {0: 0}

    return pl.pallas_call(
        kernel,
        out_shape=jax.ShapeDtypeStruct((b, f), x.dtype),
        grid_spec=pltpu.PrefetchScalarGridSpec(
            num_scalar_prefetch=0,
            grid=grid,
            in_specs=in_specs,
            out_specs=pl.BlockSpec((br, bc), lambda i, j: (i, j)),
        ),
        # Both grid axes are independent -> shard across megacore / v7x TCs.
        compiler_params=pltpu.CompilerParams(
            dimension_semantics=("parallel", "parallel")),
        **kwargs,
    )(*args)


# --------------------------------------------------------------------------
# Public API
# --------------------------------------------------------------------------

def _make_polyn_fn(n, **kw):
    """PolyN forward with a custom VJP whose backward kernel fuses the
    upstream cotangent (dx = g * (i+1) * x**i) in a single HBM pass."""
    def _impl(x):
        return _polyn_pallas(x, n, "forward", **kw)

    @jax.custom_vjp
    def fn(x):
        return _impl(x)

    def fwd(x):
        return _impl(x), x

    def bwd(x, g):
        return (_polyn_pallas(x, n, "grad", g=g, **kw),)

    fn.defvjp(fwd, bwd)
    return fn


def polyn_forward(x, n, **kw):
    return _polyn_pallas(x, n, "forward", **kw)


def polyn_derivative(x, n, **kw):
    return _polyn_pallas(x, n, "grad", **kw)


class PallasPolyN:
    """JAX/Pallas mirror of fossil.activations.PolyN."""

    def __init__(self, n: int, TYPE: str = "polyn", **kernel_kwargs):
        # TODO(synk): fossil's TYPE is an enum (self.name = TYPE.name); a plain
        #             string stands in here.
        self.TYPE = TYPE
        self.name = TYPE
        self.n = n
        self._kernel_kwargs = kernel_kwargs
        self._fn = _make_polyn_fn(n, **kernel_kwargs)

    def forward(self, x):
        return self._fn(x)

    def derivative(self, x):
        # Local derivative (chunk i -> (i+1) * x**i); upstream-gradient fusion
        # happens automatically through the custom_vjp of `forward`.
        # (forward_symbolic / derivative_symbolic / backward_symbolic are
        #  symbolic-numpy paths with no Pallas equivalent.)
        return _polyn_pallas(x, self.n, "grad", **self._kernel_kwargs)

    __call__ = forward


if __name__ == "__main__":
    key = jax.random.PRNGKey(0)
    k0, k1, k2, k3 = jax.random.split(key, 4)

    # ---- f32, chunk width h=128 (lane-aligned -> full-row kernel) ----
    n = 3
    x = jax.random.normal(k0, (16, 384), dtype=jnp.float32)
    act = PallasPolyN(n=n, min_pallas_elements=0)   # force the Pallas path
    out = jax.block_until_ready(act(x))
    ref = _polyn_xla(x, n, "forward")
    assert out.shape == x.shape and out.dtype == x.dtype
    assert jnp.allclose(out, ref, atol=1e-5, rtol=1e-5)

    # Local derivative kernel.
    dloc = jax.block_until_ready(act.derivative(x))
    dref = _polyn_xla(x, n, "grad")
    assert jnp.allclose(dloc, dref, atol=1e-5, rtol=1e-5)

    # Fused backward (custom_vjp): dx = g * local derivative in one HBM pass.
    g = jax.random.normal(k1, x.shape, dtype=x.dtype)
    _, vjp_fn = jax.vjp(act._fn, x)
    dx = jax.block_until_ready(vjp_fn(g)[0])
    assert jnp.allclose(dx, g * dref, atol=1e-4, rtol=1e-4)

    # ---- non-128-aligned feature width + uneven last chunk (masked path) ----
    x2 = jax.random.normal(k2, (10, 22), dtype=jnp.float32)
    act2 = PallasPolyN(n=4, min_pallas_elements=0)
    out2 = jax.block_until_ready(act2(x2))
    assert jnp.allclose(out2, _polyn_xla(x2, 4, "forward"), atol=1e-5, rtol=1e-5)

    # ---- bf16 input: computed natively in bf16 (v6e/v7x bf16 VALU) ----
    x3 = jax.random.normal(k3, (32, 256), dtype=jnp.bfloat16)
    act3 = PallasPolyN(n=2, min_pallas_elements=0)
    out3 = jax.block_until_ready(act3(x3))
    ref3 = _polyn_xla(x3, 2, "forward")
    assert jnp.allclose(out3.astype(jnp.float32), ref3.astype(jnp.float32),
                        atol=3e-2, rtol=3e-2)

    # ---- chunk-aligned column blocks (per-block scalar exponent path) ----
    x4 = jax.random.normal(k0, (8, 512), dtype=jnp.float32)
    out4 = jax.block_until_ready(
        _polyn_pallas(x4, 2, "forward", block_cols=256, min_pallas_elements=0))
    assert jnp.allclose(out4, _polyn_xla(x4, 2, "forward"), atol=1e-5, rtol=1e-5)

    # ---- XLA fallback for tiny activations (non-zero default threshold) ----
    act_small = PallasPolyN(n=3)
    outs = jax.block_until_ready(act_small(x))      # 6144 elems -> XLA path
    assert jnp.allclose(outs, ref, atol=1e-5, rtol=1e-5)

    print("KERNEL_OK")
</pallas_src>

<mosaic_0001>
module attributes {stable_mosaic.version = 11 : i64} {
  func.func @_fullrow_kernel(%arg0: i32, %arg1: i32, %arg2: memref<16x384xf32, #tpu.memory_space<vmem>>, %arg3: memref<16x384xf32, #tpu.memory_space<vmem>>) attributes {dimension_semantics = [#tpu.dimension_semantics<parallel>, #tpu.dimension_semantics<parallel>], iteration_bounds = array<i64: 1, 1>, scalar_prefetch = 0 : i64, scratch_operands = 0 : i64, tpu.core_type = #tpu.core_type<tc>, window_params = [{transform_indices = @transform_0, window_bounds = array<i64: 16, 384>}, {transform_indices = @transform_1, window_bounds = array<i64: 16, 384>}]} {
    %c0 = arith.constant 0 : index
    %c0_0 = arith.constant 0 : index
    %0 = vector.load %arg2[%c0, %c0_0] : memref<16x384xf32, #tpu.memory_space<vmem>>, vector<16x384xf32>
    %1 = vector.extract_strided_slice %0 {offsets = [0, 0], sizes = [16, 128], strides = [1, 1]} : vector<16x384xf32> to vector<16x128xf32>
    %c0_1 = arith.constant 0 : index
    %c0_2 = arith.constant 0 : index
    %2 = vector.load %arg3[%c0_1, %c0_2] : memref<16x384xf32, #tpu.memory_space<vmem>>, vector<16x128xf32>
    tpu.vector_store %arg3[%c0_1, %c0_2], %1 {strides = array<i32>} : memref<16x384xf32, #tpu.memory_space<vmem>>, vector<16x128xf32>,
    %3 = vector.extract_strided_slice %0 {offsets = [0, 128], sizes = [16, 128], strides = [1, 1]} : vector<16x384xf32> to vector<16x128xf32>
    %4 = arith.mulf %3, %3 : vector<16x128xf32>
    %c0_3 = arith.constant 0 : index
    %c128 = arith.constant 128 : index
    %5 = vector.load %arg3[%c0_3, %c128] : memref<16x384xf32, #tpu.memory_space<vmem>>, vector<16x128xf32>
    tpu.vector_store %arg3[%c0_3, %c128], %4 {strides = array<i32>} : memref<16x384xf32, #tpu.memory_space<vmem>>, vector<16x128xf32>,
    %6 = vector.extract_strided_slice %0 {offsets = [0, 256], sizes = [16, 128], strides = [1, 1]} : vector<16x384xf32> to vector<16x128xf32>
    %7 = arith.mulf %6, %6 : vector<16x128xf32>
    %8 = arith.mulf %6, %7 : vector<16x128xf32>
    %c0_4 = arith.constant 0 : index
    %c256 = arith.constant 256 : index
    %9 = vector.load %arg3[%c0_4, %c256] : memref<16x384xf32, #tpu.memory_space<vmem>>, vector<16x128xf32>
    tpu.vector_store %arg3[%c0_4, %c256], %8 {strides = array<i32>} : memref<16x384xf32, #tpu.memory_space<vmem>>, vector<16x128xf32>,
    return
  }
  func.func @transform_0(%arg0: i32, %arg1: i32) -> (i32, i32) {
    %c0_i32 = arith.constant 0 : i32
    return %arg0, %arg1 : i32, i32
  }
  func.func @transform_1(%arg0: i32, %arg1: i32) -> (i32, i32) {
    %c0_i32 = arith.constant 0 : i32
    return %arg0, %arg1 : i32, i32
  }
}

</mosaic_0001>

<llo_original>
// kernel: tpu_custom_call.1
$region0: #{tpu_custom_call.1}
  #allocation0 [shape = 'u32[]', space=smem, size = 0x4, offset = 0x4, fixed_abs, tag = 'smem constant byte address 0x4 - core index']
  #allocation1 [shape = 'u32[72,128]{1,0:T(1,128)}', space=vmem, size = 0x9000, scoped, tag = 'internal scratch']
  %s0 = inlined_call_operand.hbm [shape: f32[16,384], index: 0, kind: input, shape index: {}]
  %s1 = inlined_call_operand.hbm [shape: f32[16,384], index: 1, kind: output, shape index: {}]
  %s2 = sld [smem:[#allocation0]]
  $region18: #{tpu_custom_call.1} parent=0
    _
  %s4 = ssub.s32 1, %s2
  %s5 = scalar_select 0, %s4, %s2
  $region1: #{tpu_custom_call.1} parent=0
    #allocation2 [shape = 'u8[24576]{0}', space=vmem, size = 0x6000, scoped, tag = 'input window, operand 0, single buffered']
    #allocation3 [shape = 's32[1]{0}', space=sflag, size = 0x4, scoped, tag = 'scoped memory for tpu_custom_call.1']
    #allocation4 [shape = 's32[1]{0}', space=sflag, size = 0x4, scoped, tag = 'scoped memory for tpu_custom_call.1']
    #allocation5 [shape = 'u8[24576]{0}', space=vmem, size = 0x6000, scoped, tag = 'output window, operand 0, single buffered']
    %6 = vsyncpa [#allocation3], 0
    %7 = vsyncpa [#allocation4], 0
    // Predicated region
    $region2: #{tpu_custom_call.1} parent=1 // pred_check
      _
    $region3: #{tpu_custom_call.1} parent=1 // pred_check_branch
      %9 = sbr.rel (0) target = $region5
    $region4: #{tpu_custom_call.1} parent=1 // pred_region
      %11 = vsyncadd [#allocation3], 0
      %s12 = sshll.u32 %s0, 4
      %s13 = int_to_ptr.hbm [resolvable:$true] %s12
      %s14 = sshll.u32 [#allocation2], 4
      %s15 = int_to_ptr.vmem [resolvable:$true] %s14
      %20 = dma.hbm_to_vmem [thread:$0]  %s13, 768, %s15, [#allocation3], 384, 384, 24
    $region5: #{tpu_custom_call.1} parent=1 // pred_fallthru
      _
    // Predicated region
    $region6: #{tpu_custom_call.1} parent=1 // pred_check
      _
    $region7: #{tpu_custom_call.1} parent=1 // pred_check_branch
      %22 = sbr.rel (0) target = $region9
    $region8: #{tpu_custom_call.1} parent=1 // pred_region
      %24 = dma.done [#allocation3], 768
    $region9: #{tpu_custom_call.1} parent=1 // pred_fallthru
      _
    %v25 = vld [vmem:[#allocation2] sm:$0xff]
    %v26 = vld [vmem:[#allocation2 + $0x8] sm:$0xff]
    %v27 = vld [vmem:[#allocation2 + $0x10] sm:$0xff]
    %v28 = vld [vmem:[#allocation2 + $0x18] sm:$0xff]
    %v29 = vld [vmem:[#allocation2 + $0x20] sm:$0xff]
    %v30 = vld [vmem:[#allocation2 + $0x28] sm:$0xff]
    %31 = vst [vmem:[#allocation5] sm:$0xff] %v25
    %32 = vst [vmem:[#allocation5 + $0x18] sm:$0xff] %v28
    %v33 = vmul.f32 %v26, %v26
    %v34 = vmul.f32 %v29, %v29
    %35 = vst [vmem:[#allocation5 + $0x8] sm:$0xff] %v33
    %36 = vst [vmem:[#allocation5 + $0x20] sm:$0xff] %v34
    %v37 = vmul.f32 %v27, %v27
    %v38 = vmul.f32 %v30, %v30
    %v39 = vmul.f32 %v27, %v37
    %v40 = vmul.f32 %v30, %v38
    %41 = vst [vmem:[#allocation5 + $0x10] sm:$0xff] %v39
    %42 = vst [vmem:[#allocation5 + $0x28] sm:$0xff] %v40
    // Predicated region
    $region10: #{tpu_custom_call.1} parent=1 // pred_check
      _
    $region11: #{tpu_custom_call.1} parent=1 // pred_check_branch
      %44 = sbr.rel (0) target = $region13
    $region12: #{tpu_custom_call.1} parent=1 // pred_region
      %46 = vsyncadd [#allocation4], 0
      %s47 = sshll.u32 [#allocation5], 4
      %s48 = int_to_ptr.vmem [resolvable:$true] %s47
      %s49 = sshll.u32 %s1, 4
      %s50 = int_to_ptr.hbm [resolvable:$true] %s49
      %55 = dma.vmem_to_hbm [thread:$0]  %s48, 768, %s50, [#allocation4], 384, 384, 24
    $region13: #{tpu_custom_call.1} parent=1 // pred_fallthru
      _
    // Predicated region
    $region14: #{tpu_custom_call.1} parent=1 // pred_check
      _
    $region15: #{tpu_custom_call.1} parent=1 // pred_check_branch
      %57 = sbr.rel (0) target = $region17
    $region16: #{tpu_custom_call.1} parent=1 // pred_region
      %59 = dma.done [#allocation4], 768
    $region17: #{tpu_custom_call.1} parent=1 // pred_fallthru
      _
    %60 = vsyncpa [#allocation3], 1
    %61 = vsyncpa [#allocation4], 1

</llo_original>
